<compile_context>
chip_gen: v5e
topology: v5e:2x2
jax: 0.10.0
libtpu: 0.0.40
codegen_flags: <defaults>
</compile_context>

<pallas_src>
import jax
import jax.numpy as jnp
from jax import lax
from jax.experimental import pallas as pl
from jax.experimental.pallas import tpu as pltpu

LANE = 128


def decoder_kernel(hn_ref, w1_ref, b1_ref, w2t_ref, b2c_ref, out_ref):
    """out[o, i] = (relu(hn @ w1 + b1) @ w2 + b2)[i, o]  (transposed output)."""
    hn = hn_ref[...]                                        # [b, F]
    # fc1 on the MXU with f32 accumulation; bias add is a sublane-broadcast.
    h = jnp.dot(hn, w1_ref[...],
                preferred_element_type=jnp.float32) + b1_ref[...]   # [b, H]
    # ReLU on the VPU.
    h = jnp.maximum(h, 0.0)
    # fc2 as an NT matmul: (O, H) x (b, H) contracted over H -> (O, b).
    # Producing the output transposed keeps the batch on the lane axis, so the
    # store is lane-dense while HBM writeback is only O (=5) rows.
    o = lax.dot_general(w2t_ref[...], h,
                        dimension_numbers=(((1,), (1,)), ((), ())),
                        preferred_element_type=jnp.float32)          # [O, b]
    out_ref[...] = (o + b2c_ref[...]).astype(out_ref.dtype)


def decoder_forward(hn, w1, b1, w2, b2, *, block_b=8192):
    """hn [B, F], w1 [F, H], b1 [H], w2 [H, O], b2 [O] -> [B, O]."""
    B, F = hn.shape
    H = w1.shape[1]
    O = w2.shape[1]

    # Pre-arranged parameters: 2-D biases, transposed fc2 weight (O, H).
    b1_2d = b1.reshape(1, H)
    w2t = jnp.transpose(w2)            # (O, H)
    b2c = b2.reshape(O, 1)             # (O, 1) -> lane-broadcast add in kernel

    if B <= block_b:
        # Small batch: single-shot grid-free kernel, everything resident in
        # VMEM once (no pipeline prologue/epilogue, no double buffering).
        # TODO(synk): if this is called per decode step with tiny B, fuse it
        # into the producing LSTM-cell kernel to skip the hn HBM round trip.
        out_t = pl.pallas_call(
            decoder_kernel,
            out_shape=jax.ShapeDtypeStruct((O, B), hn.dtype),
            in_specs=[pl.BlockSpec(memory_space=pltpu.MemorySpace.VMEM)] * 5,
            out_specs=pl.BlockSpec(memory_space=pltpu.MemorySpace.VMEM),
        )(hn, w1, b1_2d, w2t, b2c)
        return jnp.transpose(out_t)

    # Large batch: tile B with a 1-D grid.  Round the tile to a lane multiple
    # and pad the batch up to a whole number of tiles (zero rows, sliced off
    # below) so irregular B never falls back to the all-in-VMEM path.
    block_b = max(LANE, (block_b // LANE) * LANE)
    n_blocks = pl.cdiv(B, block_b)
    B_pad = n_blocks * block_b
    hn_p = jnp.pad(hn, ((0, B_pad - B), (0, 0))) if B_pad != B else hn

    out_t = pl.pallas_call(
        decoder_kernel,
        out_shape=jax.ShapeDtypeStruct((O, B_pad), hn.dtype),
        grid=(n_blocks,),
        in_specs=[
            pl.BlockSpec((block_b, F), lambda i: (i, 0)),   # streamed hn tile
            pl.BlockSpec((F, H), lambda i: (0, 0)),          # pinned weights
            pl.BlockSpec((1, H), lambda i: (0, 0)),
            pl.BlockSpec((O, H), lambda i: (0, 0)),
            pl.BlockSpec((O, 1), lambda i: (0, 0)),
        ],
        out_specs=pl.BlockSpec((O, block_b), lambda i: (0, i)),
        compiler_params=pltpu.CompilerParams(
            dimension_semantics=("parallel",),
        ),
    )(hn_p, w1, b1_2d, w2t, b2c)

    # Drop padded tail rows, un-transpose: (O, B_pad) -> (B, O).
    return jnp.transpose(out_t[:, :B])


def reference_forward(hn, w1, b1, w2, b2):
    """Pure-JAX reference matching PyTorch Linear->ReLU->Linear semantics."""
    x = hn @ w1 + b1
    x = jnp.maximum(x, 0.0)
    return x @ w2 + b2


if __name__ == "__main__":
    # Shapes implied by the module: LSTM_output_size=32, decoder_hidden_size=64,
    # 5 output classes.
    LSTM_OUTPUT_SIZE = 32
    DECODER_HIDDEN_SIZE = 64
    OUT_SIZE = 5

    key = jax.random.PRNGKey(0)
    k_hn, k_w1, k_b1, k_w2, k_b2, k_big = jax.random.split(key, 6)

    # Deterministic parameter init (uniform, like PyTorch's default Linear range).
    bound1 = 1.0 / (LSTM_OUTPUT_SIZE ** 0.5)
    w1 = jax.random.uniform(k_w1, (LSTM_OUTPUT_SIZE, DECODER_HIDDEN_SIZE),
                            minval=-bound1, maxval=bound1, dtype=jnp.float32)
    b1 = jax.random.uniform(k_b1, (DECODER_HIDDEN_SIZE,),
                            minval=-bound1, maxval=bound1, dtype=jnp.float32)

    bound2 = 1.0 / (DECODER_HIDDEN_SIZE ** 0.5)
    w2 = jax.random.uniform(k_w2, (DECODER_HIDDEN_SIZE, OUT_SIZE),
                            minval=-bound2, maxval=bound2, dtype=jnp.float32)
    b2 = jax.random.uniform(k_b2, (OUT_SIZE,),
                            minval=-bound2, maxval=bound2, dtype=jnp.float32)

    # --- Small-batch path (grid-free, VMEM-resident) ---
    B = 8
    hn = jax.random.normal(k_hn, (B, LSTM_OUTPUT_SIZE), dtype=jnp.float32)
    out = jax.block_until_ready(decoder_forward(hn, w1, b1, w2, b2))
    ref = reference_forward(hn, w1, b1, w2, b2)
    assert out.shape == (B, OUT_SIZE), out.shape
    assert jnp.allclose(out, ref, atol=1e-5, rtol=1e-5), "small-batch mismatch"

    # --- Batched path: non-divisible B exercises the cdiv + padded-tail grid ---
    B_big = 300
    hn_big = jax.random.normal(k_big, (B_big, LSTM_OUTPUT_SIZE), dtype=jnp.float32)
    out_big = jax.block_until_ready(
        decoder_forward(hn_big, w1, b1, w2, b2, block_b=128))
    ref_big = reference_forward(hn_big, w1, b1, w2, b2)
    assert out_big.shape == (B_big, OUT_SIZE), out_big.shape
    assert jnp.allclose(out_big, ref_big, atol=1e-5, rtol=1e-5), "batched mismatch"

    print("KERNEL_OK")
</pallas_src>

<mosaic_0001>
module attributes {stable_mosaic.version = 11 : i64} {
  func.func @decoder_kernel(%arg0: memref<8x32xf32, #tpu.memory_space<vmem>>, %arg1: memref<32x64xf32, #tpu.memory_space<vmem>>, %arg2: memref<1x64xf32, #tpu.memory_space<vmem>>, %arg3: memref<5x64xf32, #tpu.memory_space<vmem>>, %arg4: memref<5x1xf32, #tpu.memory_space<vmem>>, %arg5: memref<5x8xf32, #tpu.memory_space<vmem>>) attributes {dimension_semantics = [], scalar_prefetch = 0 : i64, scratch_operands = 0 : i64, tpu.core_type = #tpu.core_type<tc>} {
    %c0 = arith.constant 0 : index
    %c0_0 = arith.constant 0 : index
    %0 = vector.load %arg0[%c0, %c0_0] : memref<8x32xf32, #tpu.memory_space<vmem>>, vector<8x32xf32>
    %c0_1 = arith.constant 0 : index
    %c0_2 = arith.constant 0 : index
    %1 = vector.load %arg1[%c0_1, %c0_2] : memref<32x64xf32, #tpu.memory_space<vmem>>, vector<32x64xf32>
    %cst = arith.constant dense<0.000000e+00> : vector<8x64xf32>
    %2 = tpu.matmul %0, %1, %cst {dimension_numbers = #tpu.dot_dimension_numbers<[1], [0], [0], [1], [0, 0, 1, 1], [], []>} : vector<8x32xf32>, vector<32x64xf32>, vector<8x64xf32> -> vector<8x64xf32>
    %c0_3 = arith.constant 0 : index
    %c0_4 = arith.constant 0 : index
    %3 = vector.load %arg2[%c0_3, %c0_4] : memref<1x64xf32, #tpu.memory_space<vmem>>, vector<1x64xf32>
    %4 = vector.broadcast %3 : vector<1x64xf32> to vector<8x64xf32>
    %5 = arith.addf %2, %4 : vector<8x64xf32>
    %cst_5 = arith.constant 0.000000e+00 : f32
    %6 = vector.broadcast %cst_5 : f32 to vector<8x64xf32>
    %7 = arith.maximumf %5, %6 : vector<8x64xf32>
    %c0_6 = arith.constant 0 : index
    %c0_7 = arith.constant 0 : index
    %8 = vector.load %arg3[%c0_6, %c0_7] : memref<5x64xf32, #tpu.memory_space<vmem>>, vector<5x64xf32>
    %cst_8 = arith.constant dense<0.000000e+00> : vector<5x8xf32>
    %9 = tpu.matmul %8, %7, %cst_8 {dimension_numbers = #tpu.dot_dimension_numbers<[1], [1], [0], [0], [0, 0, 1, 0], [], []>} : vector<5x64xf32>, vector<8x64xf32>, vector<5x8xf32> -> vector<5x8xf32>
    %c0_9 = arith.constant 0 : index
    %c0_10 = arith.constant 0 : index
    %10 = vector.load %arg4[%c0_9, %c0_10] : memref<5x1xf32, #tpu.memory_space<vmem>>, vector<5x1xf32>
    %11 = vector.broadcast %10 : vector<5x1xf32> to vector<5x8xf32>
    %12 = arith.addf %9, %11 : vector<5x8xf32>
    %c0_11 = arith.constant 0 : index
    %c0_12 = arith.constant 0 : index
    %13 = vector.load %arg5[%c0_11, %c0_12] : memref<5x8xf32, #tpu.memory_space<vmem>>, vector<5x8xf32>
    tpu.vector_store %arg5[%c0_11, %c0_12], %12 {strides = array<i32>} : memref<5x8xf32, #tpu.memory_space<vmem>>, vector<5x8xf32>,
    return
  }
}

</mosaic_0001>

<llo_original>
// kernel: tpu_custom_call.1
$region0: #{tpu_custom_call.1}
  #allocation0 [shape = 'u32[]', space=smem, size = 0x4, offset = 0x4, fixed_abs, tag = 'smem constant byte address 0x4 - core index']
  #allocation1 [shape = 'u32[72,128]{1,0:T(1,128)}', space=vmem, size = 0x9000, scoped, tag = 'internal scratch']
  %s0 = inlined_call_operand.vmem [shape: f32[8,32], index: 0, kind: input, shape index: {}]
  %s1 = inlined_call_operand.hbm [shape: f32[32,64], index: 1, kind: input, shape index: {}]
  %s2 = inlined_call_operand.vmem [shape: f32[1,64], index: 2, kind: input, shape index: {}]
  %s3 = inlined_call_operand.hbm [shape: f32[5,64], index: 3, kind: input, shape index: {}]
  %s4 = inlined_call_operand.vmem [shape: f32[5,1], index: 4, kind: input, shape index: {}]
  %s5 = inlined_call_operand.hbm [shape: f32[5,8], index: 5, kind: output, shape index: {}]
  %s6 = sld [smem:[#allocation0]]
  $region38: #{tpu_custom_call.1} parent=0
    _
  %s8 = ssub.s32 1, %s6
  %s9 = scalar_select 0, %s8, %s6
  $region1: #{tpu_custom_call.1} parent=0
    #allocation2 [shape = 'u8[16384]{0}', space=vmem, size = 0x4000, scoped, tag = 'input window, operand 1, single buffered']
    #allocation3 [shape = 's32[1]{0}', space=sflag, size = 0x4, scoped, tag = 'scoped memory for tpu_custom_call.1']
    #allocation4 [shape = 's32[1]{0}', space=sflag, size = 0x4, scoped, tag = 'scoped memory for tpu_custom_call.1']
    #allocation5 [shape = 'u8[4096]{0}', space=vmem, size = 0x1000, scoped, tag = 'input window, operand 3, single buffered']
    #allocation6 [shape = 's32[1]{0}', space=sflag, size = 0x4, scoped, tag = 'scoped memory for tpu_custom_call.1']
    #allocation7 [shape = 'u8[4096]{0}', space=vmem, size = 0x1000, scoped, tag = 'output window, operand 0, single buffered']
    %10 = vsyncpa [#allocation3], 0
    %11 = vsyncpa [#allocation6], 0
    %12 = vsyncpa [#allocation4], 0
    // Predicated region
    $region2: #{tpu_custom_call.1} parent=1 // pred_check
      _
    $region3: #{tpu_custom_call.1} parent=1 // pred_check_branch
      %14 = sbr.rel (0) target = $region5
    $region4: #{tpu_custom_call.1} parent=1 // pred_region
      _
    $region5: #{tpu_custom_call.1} parent=1 // pred_fallthru
      _
    // Predicated region
    $region6: #{tpu_custom_call.1} parent=1 // pred_check
      _
    $region7: #{tpu_custom_call.1} parent=1 // pred_check_branch
      %16 = sbr.rel (0) target = $region9
    $region8: #{tpu_custom_call.1} parent=1 // pred_region
      %18 = vsyncadd [#allocation3], 0
      %s19 = sshll.u32 %s1, 4
      %s20 = int_to_ptr.hbm [resolvable:$true] %s19
      %s21 = sshll.u32 [#allocation2], 4
      %s22 = int_to_ptr.vmem [resolvable:$true] %s21
      %27 = dma.hbm_to_vmem [thread:$0]  %s20, 512, %s22, [#allocation3], 128, 128, 8
    $region9: #{tpu_custom_call.1} parent=1 // pred_fallthru
      _
    // Predicated region
    $region10: #{tpu_custom_call.1} parent=1 // pred_check
      _
    $region11: #{tpu_custom_call.1} parent=1 // pred_check_branch
      %29 = sbr.rel (0) target = $region13
    $region12: #{tpu_custom_call.1} parent=1 // pred_region
      _
    $region13: #{tpu_custom_call.1} parent=1 // pred_fallthru
      _
    // Predicated region
    $region14: #{tpu_custom_call.1} parent=1 // pred_check
      _
    $region15: #{tpu_custom_call.1} parent=1 // pred_check_branch
      %31 = sbr.rel (0) target = $region17
    $region16: #{tpu_custom_call.1} parent=1 // pred_region
      %33 = vsyncadd [#allocation6], 0
      %s35 = sshll.u32 %s3, 4
      %s36 = int_to_ptr.hbm [resolvable:$true] %s35
      %s37 = sshll.u32 [#allocation5], 4
      %s38 = int_to_ptr.vmem [resolvable:$true] %s37
      %40 = dma.hbm_to_vmem [thread:$0]  %s36, 128, %s38, [#allocation6]
    $region17: #{tpu_custom_call.1} parent=1 // pred_fallthru
      _
    // Predicated region
    $region18: #{tpu_custom_call.1} parent=1 // pred_check
      _
    $region19: #{tpu_custom_call.1} parent=1 // pred_check_branch
      %42 = sbr.rel (0) target = $region21
    $region20: #{tpu_custom_call.1} parent=1 // pred_region
      _
    $region21: #{tpu_custom_call.1} parent=1 // pred_fallthru
      _
    // Predicated region
    $region22: #{tpu_custom_call.1} parent=1 // pred_check
      _
    $region23: #{tpu_custom_call.1} parent=1 // pred_check_branch
      %44 = sbr.rel (0) target = $region25
    $region24: #{tpu_custom_call.1} parent=1 // pred_region
      %46 = dma.done [#allocation3], 512
    $region25: #{tpu_custom_call.1} parent=1 // pred_fallthru
      _
    // Predicated region
    $region26: #{tpu_custom_call.1} parent=1 // pred_check
      _
    $region27: #{tpu_custom_call.1} parent=1 // pred_check_branch
      %48 = sbr.rel (0) target = $region29
    $region28: #{tpu_custom_call.1} parent=1 // pred_region
      %50 = dma.done [#allocation6], 128
    $region29: #{tpu_custom_call.1} parent=1 // pred_fallthru
      _
    %v51 = vld [vmem:[%s0] sm:$0xff]
    %v52 = vld [vmem:[#allocation2] sm:$0xff]
    %v53 = vld [vmem:[#allocation2 + $0x8] sm:$0xff]
    %v54 = vld [vmem:[#allocation2 + $0x10] sm:$0xff]
    %v55 = vld [vmem:[#allocation2 + $0x18] sm:$0xff]
    %v56 = vld [vmem:[%s2] sm:$0x1]
    %v58 = vperm.slane %v56, 0
    %vm60 = vcmask 261120
    %v62 = vsel %vm60, %v51, 0
    %64 = vmatpush.msra.mxu0 0.0
    %65 = vmatpush.msra.mxu0 0.0
    %66 = vmatpush.msra.mxu0 0.0
    %67 = vmatpush.msra.mxu0 0.0
    %68 = vmatpush.msra.mxu0 0.0
    %69 = vmatpush.msra.mxu0 0.0
    %70 = vmatpush.msra.mxu0 0.0
    %71 = vmatpush.msra.mxu0 0.0
    %72 = vmatpush.msra.mxu0 0.0
    %73 = vmatpush.msra.mxu0 0.0
    %74 = vmatpush.msra.mxu0 0.0
    %75 = vmatpush.msra.mxu0 0.0
    %76 = vmatpush.msra.mxu0 %v55
    %77 = vmatpush.msra.mxu0 %v54
    %78 = vmatpush.msra.mxu0 %v53
    %79 = vmatpush.msra.mxu0 %v52
    %80 = vmatmul.f32.gmra.mxu0 %v62
    %v81 = vpop.f32.mrf.mxu0
    %v82 = vadd.f32 %v58, %v81
    %83 = vdwg.mxu0
    %v84 = vmax.f32 %v82, 0.0
    %v85 = vld [vmem:[#allocation5] sm:$0x1f]
    %v86 = vld [vmem:[%s4] sm:$0x1f]
    %88 = vset.pattern.permute.xlu0 0
    %89 = vperm.xlu0 %88, %v86
    %v90 = vpop.permute.xlu0 %89
    %vm92 = vcmask 523264
    %v94 = vsel %vm92, %v85, 0
    %v97 = vsel %vm92, %v84, 0
    %99 = vmatpush.xpose.msra.mxu0 0.0
    %100 = vmatpush.xpose.msra.mxu0 0.0
    %101 = vmatpush.xpose.msra.mxu0 0.0
    %102 = vmatpush.xpose.msra.mxu0 0.0
    %103 = vmatpush.xpose.msra.mxu0 0.0
    %104 = vmatpush.xpose.msra.mxu0 0.0
    %105 = vmatpush.xpose.msra.mxu0 0.0
    %106 = vmatpush.xpose.msra.mxu0 0.0
    %107 = vmatpush.xpose.msra.mxu0 0.0
    %108 = vmatpush.xpose.msra.mxu0 0.0
    %109 = vmatpush.xpose.msra.mxu0 0.0
    %110 = vmatpush.xpose.msra.mxu0 0.0
    %111 = vmatpush.xpose.msra.mxu0 0.0
    %112 = vmatpush.xpose.msra.mxu0 0.0
    %113 = vmatpush.xpose.msra.mxu0 0.0
    %114 = vmatpush.xpose.msra.mxu0 %v97
    %115 = vmatmul.f32.gmra.mxu0 %v94
    %v116 = vpop.f32.mrf.mxu0
    %v117 = vadd.f32 %v90, %v116
    %118 = vdwg.mxu0
    %vm119 = vcmask 61440
    %120 = vst.msk [vmem:[#allocation7] sm:$0x1f] %vm119, %v117
    // Predicated region
    $region30: #{tpu_custom_call.1} parent=1 // pred_check
      _
    $region31: #{tpu_custom_call.1} parent=1 // pred_check_branch
      %122 = sbr.rel (0) target = $region33
    $region32: #{tpu_custom_call.1} parent=1 // pred_region
      %124 = vsyncadd [#allocation4], 0
      %s126 = sshll.u32 [#allocation7], 4
      %s127 = int_to_ptr.vmem [resolvable:$true] %s126
      %s128 = sshll.u32 %s5, 4
      %s129 = int_to_ptr.hbm [resolvable:$true] %s128
      %131 = dma.vmem_to_hbm [thread:$0]  %s127, 128, %s129, [#allocation4]
    $region33: #{tpu_custom_call.1} parent=1 // pred_fallthru
      _
    // Predicated region
    $region34: #{tpu_custom_call.1} parent=1 // pred_check
      _
    $region35: #{tpu_custom_call.1} parent=1 // pred_check_branch
      %133 = sbr.rel (0) target = $region37
    $region36: #{tpu_custom_call.1} parent=1 // pred_region
      %135 = dma.done [#allocation4], 128
    $region37: #{tpu_custom_call.1} parent=1 // pred_fallthru
      _
    %136 = vsyncpa [#allocation3], 1
    %137 = vsyncpa [#allocation6], 1
    %138 = vsyncpa [#allocation4], 1

</llo_original>
